<compile_context>
chip_gen: v6e
topology: v6e:2x2x1
jax: 0.10.0
libtpu: 0.0.40
codegen_flags: <defaults>
</compile_context>

<pallas_src>
import functools
import math

import jax
import jax.numpy as jnp
from jax.experimental import pallas as pl
from jax.experimental.pallas import tpu as pltpu


def _log_sigmoid(x):
    """log(sigmoid(x)) = -softplus(-x), using only exp/log/max/abs (safe lowering)."""
    return -(jnp.maximum(-x, 0.0) + jnp.log(1.0 + jnp.exp(-jnp.abs(x))))


def _nll_surv_kernel(h_ref, y_ref, c_ref, out_ref, *, alpha, log_eps, batch, block_b):
    pid = pl.program_id(0)

    h = h_ref[...].astype(jnp.float32)   # (C, TB)  classes on sublanes, batch on lanes
    y = y_ref[...].astype(jnp.int32)     # (1, TB)
    c = c_ref[...].astype(jnp.float32)   # (1, TB)

    n_cls, tb = h.shape

    # log(1 - sigmoid(h)) == log_sigmoid(-h): one softplus per element (EUP).
    log1m = _log_sigmoid(-h)                                             # (C, TB)

    cls = jax.lax.broadcasted_iota(jnp.int32, (n_cls, tb), 0)
    mask_lt = cls < y        # k <  y -> contributes to S_padded[y]
    mask_eq = cls == y       # k == y -> logit at the label bin

    # log S_padded[y] = sum_{k<y} log(1 - hz_k)   (sublane reduction over C).
    log_s_prev_raw = jnp.sum(jnp.where(mask_lt, log1m, 0.0), axis=0, keepdims=True)
    # Logit at the label bin (exactly one element per column).
    h_at_y = jnp.sum(jnp.where(mask_eq, h, 0.0), axis=0, keepdims=True)  # (1, TB)

    # Narrow (1, TB) transcendentals from the gathered logit -- no second
    # full-tile masked reduction.
    log_h_raw = _log_sigmoid(h_at_y)           # log hazards[y]
    log1m_at_y = _log_sigmoid(-h_at_y)         # log(1 - hazards[y])
    log_s_this_raw = log_s_prev_raw + log1m_at_y   # log S_padded[y+1]

    # clamp(x, min=eps) then log  ==  max(log(x), log(eps))  (log is monotone).
    log_eps_f = jnp.float32(log_eps)
    log_s_prev = jnp.maximum(log_s_prev_raw, log_eps_f)
    log_s_this = jnp.maximum(log_s_this_raw, log_eps_f)
    log_h_this = jnp.maximum(log_h_raw, log_eps_f)

    uncensored = -(1.0 - c) * (log_s_prev + log_h_this)                  # (1, TB)
    censored = -c * log_s_this                                           # (1, TB)
    neg_l = censored + uncensored
    loss = (1.0 - alpha) * neg_l + alpha * uncensored                    # (1, TB)

    # Mask lanes past the true batch size in a (possibly partial) last tile.
    col = pid * block_b + jax.lax.broadcasted_iota(jnp.int32, (1, tb), 1)
    loss = jnp.where(col < batch, loss, 0.0)

    # One per-tile partial; final reduce + mean divide happen in the wrapper.
    out_ref[0, 0] = jnp.sum(loss)


def _pick_block_b(batch, n_cls, itemsize, block_cap=None):
    """Largest lane-tile that keeps double-buffered inputs under ~12 MiB."""
    c_sub = -(-n_cls // 8) * 8                       # sublane padding of the h tile
    bytes_per_lane = c_sub * itemsize + 2 * 8 * 4    # h + y + c (y/c sublane-pad to 8)
    budget = 12 * 1024 * 1024
    max_lanes = max(128, budget // (2 * bytes_per_lane))   # /2: double buffering
    bb = min(batch, max_lanes, 32768)
    if block_cap is not None:
        bb = min(bb, block_cap)
    if bb < batch:
        # Lane dim of a partial block must be a multiple of 128 (else full dim).
        bb = max(128, (bb // 128) * 128)
    return bb


def nll_surv_loss(h, y, c, *, alpha=0.0, eps=1e-07, reduction="mean", block_cap=None):
    B, C = h.shape

    # Lane-dense layout: batch on lanes.  (See TODO(synk) above about the transpose.)
    h_t = jnp.transpose(h)                              # (C, B), native dtype
    y_row = jnp.reshape(y, (1, B)).astype(jnp.int32)    # (1, B)
    c_row = jnp.reshape(c, (1, B)).astype(jnp.float32)  # (1, B)

    itemsize = jnp.dtype(h.dtype).itemsize
    block_b = _pick_block_b(B, C, itemsize, block_cap)
    grid_b = pl.cdiv(B, block_b)

    kernel = functools.partial(
        _nll_surv_kernel,
        alpha=float(alpha),
        log_eps=math.log(float(eps)),
        batch=B,
        block_b=block_b,
    )

    cost = pl.CostEstimate(
        flops=10 * B * C,
        transcendentals=B * C + 3 * B,
        bytes_accessed=B * C * itemsize + 2 * B * 4 + 4 * grid_b,
    )

    partials = pl.pallas_call(
        kernel,
        out_shape=jax.ShapeDtypeStruct((grid_b, 1), jnp.float32),
        grid=(grid_b,),
        in_specs=[
            pl.BlockSpec((C, block_b), lambda i: (0, i)),
            pl.BlockSpec((1, block_b), lambda i: (0, i)),
            pl.BlockSpec((1, block_b), lambda i: (0, i)),
        ],
        out_specs=pl.BlockSpec((1, 1), lambda i: (i, 0),
                               memory_space=pltpu.MemorySpace.SMEM),
        compiler_params=pltpu.CompilerParams(
            dimension_semantics=("parallel",),
            vmem_limit_bytes=32 * 1024 * 1024),
        cost_estimate=cost,
    )(h_t, y_row, c_row)

    total = jnp.sum(partials)
    if reduction == "mean":
        total = total / jnp.float32(B)
    return total


class NLLSurvLoss:
    """JAX/Pallas port of the PyTorch NLLSurvLoss module (forward only)."""

    def __init__(self, alpha=0.0, eps=1e-07, reduction="mean"):
        if reduction not in ("mean", "sum"):
            raise ValueError(f"Bad input for reduction: {reduction}")
        self.alpha = alpha
        self.eps = eps
        self.reduction = reduction

    def __call__(self, h, y, t, c):
        # t (event times) is unused by the reference forward pass.
        del t
        return nll_surv_loss(h, y, c, alpha=self.alpha, eps=self.eps,
                             reduction=self.reduction)


def _nll_loss_ref(h, y, c, alpha=0.0, eps=1e-07, reduction="mean"):
    """Pure-JAX reference mirroring the PyTorch nll_loss exactly."""
    y = y.reshape(-1, 1).astype(jnp.int32)
    c = c.reshape(-1, 1).astype(jnp.int32)
    hazards = jax.nn.sigmoid(h)
    S = jnp.cumprod(1.0 - hazards, axis=1)
    S_padded = jnp.concatenate([jnp.ones_like(c, dtype=h.dtype), S], axis=1)
    s_prev = jnp.maximum(jnp.take_along_axis(S_padded, y, axis=1), eps)
    h_this = jnp.maximum(jnp.take_along_axis(hazards, y, axis=1), eps)
    s_this = jnp.maximum(jnp.take_along_axis(S_padded, y + 1, axis=1), eps)
    uncensored = -(1 - c) * (jnp.log(s_prev) + jnp.log(h_this))
    censored = -c * jnp.log(s_this)
    neg_l = censored + uncensored
    loss = (1 - alpha) * neg_l + alpha * uncensored
    return loss.mean() if reduction == "mean" else loss.sum()


if __name__ == "__main__":
    key = jax.random.PRNGKey(0)

    # Case 1: small shapes, single tile, 'mean'.
    B, C = 8, 16
    kh, ky, kt, kc = jax.random.split(key, 4)
    h = jax.random.normal(kh, (B, C), dtype=jnp.float32)
    y = jax.random.randint(ky, (B,), 0, C, dtype=jnp.int32)   # true time-bin labels
    t = jax.random.uniform(kt, (B,), dtype=jnp.float32)       # event times (unused)
    c = jax.random.randint(kc, (B,), 0, 2, dtype=jnp.int32)   # censorship indicator

    loss_fn = NLLSurvLoss(alpha=0.0, eps=1e-07, reduction="mean")
    loss = jax.block_until_ready(loss_fn(h, y, t, c))
    ref = jax.block_until_ready(_nll_loss_ref(h, y, c, alpha=0.0, reduction="mean"))
    assert jnp.allclose(loss, ref, rtol=1e-5, atol=1e-5), (loss, ref)

    # Case 2: multi-tile with a partial (masked) last tile, 'sum', alpha != 0.
    B2, C2 = 300, 12
    k2h, k2y, k2c = jax.random.split(jax.random.PRNGKey(0), 3)
    h2 = jax.random.normal(k2h, (B2, C2), dtype=jnp.float32)
    y2 = jax.random.randint(k2y, (B2,), 0, C2, dtype=jnp.int32)
    c2 = jax.random.randint(k2c, (B2,), 0, 2, dtype=jnp.int32)
    loss2 = jax.block_until_ready(
        nll_surv_loss(h2, y2, c2, alpha=0.3, eps=1e-07, reduction="sum",
                      block_cap=128))
    ref2 = jax.block_until_ready(
        _nll_loss_ref(h2, y2, c2, alpha=0.3, eps=1e-07, reduction="sum"))
    assert jnp.allclose(loss2, ref2, rtol=1e-5, atol=1e-4), (loss2, ref2)

    print("KERNEL_OK")
</pallas_src>

<mosaic_0001>
module attributes {stable_mosaic.version = 11 : i64} {
  func.func @_nll_surv_kernel(%arg0: i32, %arg1: memref<16x8xf32, #tpu.memory_space<vmem>>, %arg2: memref<1x8xi32, #tpu.memory_space<vmem>>, %arg3: memref<1x8xf32, #tpu.memory_space<vmem>>, %arg4: memref<1x1xf32, #tpu.memory_space<smem>>) attributes {dimension_semantics = [#tpu.dimension_semantics<parallel>], iteration_bounds = array<i64: 1>, scalar_prefetch = 0 : i64, scratch_operands = 0 : i64, tpu.core_type = #tpu.core_type<tc>, window_params = [{transform_indices = @transform_0, window_bounds = array<i64: 16, 8>}, {transform_indices = @transform_1, window_bounds = array<i64: 1, 8>}, {transform_indices = @transform_2, window_bounds = array<i64: 1, 8>}, {transform_indices = @transform_3, window_bounds = array<i64: 1, 1>}]} {
    %c0 = arith.constant 0 : index
    %c0_0 = arith.constant 0 : index
    %0 = vector.load %arg1[%c0, %c0_0] : memref<16x8xf32, #tpu.memory_space<vmem>>, vector<16x8xf32>
    %c0_1 = arith.constant 0 : index
    %c0_2 = arith.constant 0 : index
    %1 = vector.load %arg2[%c0_1, %c0_2] : memref<1x8xi32, #tpu.memory_space<vmem>>, vector<1x8xi32>
    %c0_3 = arith.constant 0 : index
    %c0_4 = arith.constant 0 : index
    %2 = vector.load %arg3[%c0_3, %c0_4] : memref<1x8xf32, #tpu.memory_space<vmem>>, vector<1x8xf32>
    %cst = arith.constant 0.000000e+00 : f32
    %3 = vector.broadcast %cst : f32 to vector<16x8xf32>
    %4 = arith.subf %3, %0 : vector<16x8xf32>
    %cst_5 = arith.constant 0.000000e+00 : f32
    %5 = vector.broadcast %cst_5 : f32 to vector<16x8xf32>
    %6 = arith.subf %5, %4 : vector<16x8xf32>
    %cst_6 = arith.constant 0.000000e+00 : f32
    %7 = vector.broadcast %cst_6 : f32 to vector<16x8xf32>
    %8 = arith.maximumf %6, %7 : vector<16x8xf32>
    %9 = math.absf %4 : vector<16x8xf32>
    %cst_7 = arith.constant 0.000000e+00 : f32
    %10 = vector.broadcast %cst_7 : f32 to vector<16x8xf32>
    %11 = arith.subf %10, %9 : vector<16x8xf32>
    %12 = math.exp %11 : vector<16x8xf32>
    %cst_8 = arith.constant 1.000000e+00 : f32
    %13 = vector.broadcast %cst_8 : f32 to vector<16x8xf32>
    %14 = arith.addf %13, %12 : vector<16x8xf32>
    %15 = math.log %14 : vector<16x8xf32>
    %16 = arith.addf %8, %15 : vector<16x8xf32>
    %cst_9 = arith.constant 0.000000e+00 : f32
    %17 = vector.broadcast %cst_9 : f32 to vector<16x8xf32>
    %18 = arith.subf %17, %16 : vector<16x8xf32>
    %19 = tpu.iota {dimensions = array<i32: 0>} : vector<16x8xi32>
    %20 = vector.broadcast %1 : vector<1x8xi32> to vector<16x8xi32>
    %21 = arith.cmpi slt, %19, %20 : vector<16x8xi32>
    %22 = vector.broadcast %1 : vector<1x8xi32> to vector<16x8xi32>
    %23 = arith.cmpi eq, %19, %22 : vector<16x8xi32>
    %cst_10 = arith.constant 0.000000e+00 : f32
    %24 = vector.broadcast %cst_10 : f32 to vector<16x8xf32>
    %25 = arith.select %21, %18, %24 : vector<16x8xi1>, vector<16x8xf32>
    %cst_11 = arith.constant dense<0.000000e+00> : vector<8xf32>
    %26 = vector.multi_reduction <add>, %25, %cst_11 [0] : vector<16x8xf32> to vector<8xf32>
    %27 = vector.shape_cast %26 : vector<8xf32> to vector<1x8xf32>
    %cst_12 = arith.constant 0.000000e+00 : f32
    %28 = vector.broadcast %cst_12 : f32 to vector<16x8xf32>
    %29 = arith.select %23, %0, %28 : vector<16x8xi1>, vector<16x8xf32>
    %cst_13 = arith.constant dense<0.000000e+00> : vector<8xf32>
    %30 = vector.multi_reduction <add>, %29, %cst_13 [0] : vector<16x8xf32> to vector<8xf32>
    %31 = vector.shape_cast %30 : vector<8xf32> to vector<1x8xf32>
    %cst_14 = arith.constant 0.000000e+00 : f32
    %32 = vector.broadcast %cst_14 : f32 to vector<1x8xf32>
    %33 = arith.subf %32, %31 : vector<1x8xf32>
    %cst_15 = arith.constant 0.000000e+00 : f32
    %34 = vector.broadcast %cst_15 : f32 to vector<1x8xf32>
    %35 = arith.maximumf %33, %34 : vector<1x8xf32>
    %36 = math.absf %31 : vector<1x8xf32>
    %cst_16 = arith.constant 0.000000e+00 : f32
    %37 = vector.broadcast %cst_16 : f32 to vector<1x8xf32>
    %38 = arith.subf %37, %36 : vector<1x8xf32>
    %39 = math.exp %38 : vector<1x8xf32>
    %cst_17 = arith.constant 1.000000e+00 : f32
    %40 = vector.broadcast %cst_17 : f32 to vector<1x8xf32>
    %41 = arith.addf %40, %39 : vector<1x8xf32>
    %42 = math.log %41 : vector<1x8xf32>
    %43 = arith.addf %35, %42 : vector<1x8xf32>
    %cst_18 = arith.constant 0.000000e+00 : f32
    %44 = vector.broadcast %cst_18 : f32 to vector<1x8xf32>
    %45 = arith.subf %44, %43 : vector<1x8xf32>
    %cst_19 = arith.constant 0.000000e+00 : f32
    %46 = vector.broadcast %cst_19 : f32 to vector<1x8xf32>
    %47 = arith.subf %46, %31 : vector<1x8xf32>
    %cst_20 = arith.constant 0.000000e+00 : f32
    %48 = vector.broadcast %cst_20 : f32 to vector<1x8xf32>
    %49 = arith.subf %48, %47 : vector<1x8xf32>
    %cst_21 = arith.constant 0.000000e+00 : f32
    %50 = vector.broadcast %cst_21 : f32 to vector<1x8xf32>
    %51 = arith.maximumf %49, %50 : vector<1x8xf32>
    %52 = math.absf %47 : vector<1x8xf32>
    %cst_22 = arith.constant 0.000000e+00 : f32
    %53 = vector.broadcast %cst_22 : f32 to vector<1x8xf32>
    %54 = arith.subf %53, %52 : vector<1x8xf32>
    %55 = math.exp %54 : vector<1x8xf32>
    %cst_23 = arith.constant 1.000000e+00 : f32
    %56 = vector.broadcast %cst_23 : f32 to vector<1x8xf32>
    %57 = arith.addf %56, %55 : vector<1x8xf32>
    %58 = math.log %57 : vector<1x8xf32>
    %59 = arith.addf %51, %58 : vector<1x8xf32>
    %cst_24 = arith.constant 0.000000e+00 : f32
    %60 = vector.broadcast %cst_24 : f32 to vector<1x8xf32>
    %61 = arith.subf %60, %59 : vector<1x8xf32>
    %62 = arith.addf %27, %61 : vector<1x8xf32>
    %cst_25 = arith.constant -16.1180954 : f32
    %63 = vector.broadcast %cst_25 : f32 to vector<1x8xf32>
    %64 = arith.maximumf %27, %63 : vector<1x8xf32>
    %cst_26 = arith.constant -16.1180954 : f32
    %65 = vector.broadcast %cst_26 : f32 to vector<1x8xf32>
    %66 = arith.maximumf %62, %65 : vector<1x8xf32>
    %cst_27 = arith.constant -16.1180954 : f32
    %67 = vector.broadcast %cst_27 : f32 to vector<1x8xf32>
    %68 = arith.maximumf %45, %67 : vector<1x8xf32>
    %cst_28 = arith.constant 1.000000e+00 : f32
    %69 = vector.broadcast %cst_28 : f32 to vector<1x8xf32>
    %70 = arith.subf %69, %2 : vector<1x8xf32>
    %cst_29 = arith.constant 0.000000e+00 : f32
    %71 = vector.broadcast %cst_29 : f32 to vector<1x8xf32>
    %72 = arith.subf %71, %70 : vector<1x8xf32>
    %73 = arith.addf %64, %68 : vector<1x8xf32>
    %74 = arith.mulf %72, %73 : vector<1x8xf32>
    %cst_30 = arith.constant 0.000000e+00 : f32
    %75 = vector.broadcast %cst_30 : f32 to vector<1x8xf32>
    %76 = arith.subf %75, %2 : vector<1x8xf32>
    %77 = arith.mulf %76, %66 : vector<1x8xf32>
    %78 = arith.addf %77, %74 : vector<1x8xf32>
    %cst_31 = arith.constant 1.000000e+00 : f32
    %79 = vector.broadcast %cst_31 : f32 to vector<1x8xf32>
    %80 = arith.mulf %79, %78 : vector<1x8xf32>
    %cst_32 = arith.constant 0.000000e+00 : f32
    %81 = vector.broadcast %cst_32 : f32 to vector<1x8xf32>
    %82 = arith.mulf %81, %74 : vector<1x8xf32>
    %83 = arith.addf %80, %82 : vector<1x8xf32>
    %c8_i32 = arith.constant 8 : i32
    %84 = arith.muli %arg0, %c8_i32 : i32
    %85 = tpu.iota {dimensions = array<i32: 1>} : vector<1x8xi32>
    %86 = vector.broadcast %84 : i32 to vector<1x8xi32>
    %87 = arith.addi %86, %85 : vector<1x8xi32>
    %c8_i32_33 = arith.constant 8 : i32
    %88 = vector.broadcast %c8_i32_33 : i32 to vector<1x8xi32>
    %89 = arith.cmpi slt, %87, %88 : vector<1x8xi32>
    %cst_34 = arith.constant 0.000000e+00 : f32
    %90 = vector.broadcast %cst_34 : f32 to vector<1x8xf32>
    %91 = arith.select %89, %83, %90 : vector<1x8xi1>, vector<1x8xf32>
    %92 = vector.shape_cast %91 : vector<1x8xf32> to vector<1x1x8xf32>
    %cst_35 = arith.constant dense<0.000000e+00> : vector<1xf32>
    %93 = vector.multi_reduction <add>, %92, %cst_35 [1, 2] : vector<1x1x8xf32> to vector<1xf32>
    %94 = vector.shape_cast %93 : vector<1xf32> to vector<1x1x1xf32>
    %95 = vector.extract %94[0, 0, 0] : f32 from vector<1x1x1xf32>
    %c0_36 = arith.constant 0 : index
    %c0_37 = arith.constant 0 : index
    %96 = memref.load %arg4[%c0_36, %c0_37] : memref<1x1xf32, #tpu.memory_space<smem>>
    memref.store %95, %arg4[%c0_36, %c0_37] : memref<1x1xf32, #tpu.memory_space<smem>>
    return
  }
  func.func @transform_0(%arg0: i32) -> (i32, i32) {
    %c0_i32 = arith.constant 0 : i32
    %c0_i32_0 = arith.constant 0 : i32
    return %c0_i32, %arg0 : i32, i32
  }
  func.func @transform_1(%arg0: i32) -> (i32, i32) {
    %c0_i32 = arith.constant 0 : i32
    %c0_i32_0 = arith.constant 0 : i32
    return %c0_i32, %arg0 : i32, i32
  }
  func.func @transform_2(%arg0: i32) -> (i32, i32) {
    %c0_i32 = arith.constant 0 : i32
    %c0_i32_0 = arith.constant 0 : i32
    return %c0_i32, %arg0 : i32, i32
  }
  func.func @transform_3(%arg0: i32) -> (i32, i32) {
    %c0_i32 = arith.constant 0 : i32
    %c0_i32_0 = arith.constant 0 : i32
    return %arg0, %c0_i32 : i32, i32
  }
}

</mosaic_0001>

<llo_original>
// kernel: tpu_custom_call.1
$region0: #{tpu_custom_call.1}
  #allocation0 [shape = 'u32[]', space=smem, size = 0x4, offset = 0x4, fixed_abs, tag = 'smem constant byte address 0x4 - core index']
  #allocation1 [shape = 'u32[144,128]{1,0:T(1,128)}', space=vmem, size = 0x12000, scoped, tag = 'internal scratch']
  %s0 = inlined_call_operand.vmem [shape: f32[16,8], index: 0, kind: input, shape index: {}]
  %s1 = inlined_call_operand.vmem [shape: s32[1,8], index: 1, kind: input, shape index: {}]
  %s2 = inlined_call_operand.vmem [shape: f32[1,8], index: 2, kind: input, shape index: {}]
  %s3 = inlined_call_operand.hbm [shape: f32[1,1], index: 3, kind: output, shape index: {}]
  %s4 = sld [smem:[#allocation0]]
  $region22: #{tpu_custom_call.1} parent=0
    _
  %s6 = ssub.s32 1, %s4
  %s7 = scalar_select 0, %s6, %s4
  $region1: #{tpu_custom_call.1} parent=0
    #allocation2 [shape = 'u8[512]{0}', space=smem, size = 0x200, scoped, tag = 'output window, operand 0, single buffered']
    #allocation3 [shape = 's32[1]{0}', space=sflag, size = 0x4, scoped, tag = 'scoped memory for tpu_custom_call.1']
    %8 = vsyncpa [#allocation3], 0
    // Predicated region
    $region2: #{tpu_custom_call.1} parent=1 // pred_check
      _
    $region3: #{tpu_custom_call.1} parent=1 // pred_check_branch
      %10 = sbr.rel (0) target = $region5
    $region4: #{tpu_custom_call.1} parent=1 // pred_region
      _
    $region5: #{tpu_custom_call.1} parent=1 // pred_fallthru
      _
    // Predicated region
    $region6: #{tpu_custom_call.1} parent=1 // pred_check
      _
    $region7: #{tpu_custom_call.1} parent=1 // pred_check_branch
      %12 = sbr.rel (0) target = $region9
    $region8: #{tpu_custom_call.1} parent=1 // pred_region
      _
    $region9: #{tpu_custom_call.1} parent=1 // pred_fallthru
      _
    // Predicated region
    $region10: #{tpu_custom_call.1} parent=1 // pred_check
      _
    $region11: #{tpu_custom_call.1} parent=1 // pred_check_branch
      %14 = sbr.rel (0) target = $region13
    $region12: #{tpu_custom_call.1} parent=1 // pred_region
      _
    $region13: #{tpu_custom_call.1} parent=1 // pred_fallthru
      _
    %v15 = vld [vmem:[%s0] sm:$0xff]
    %v16 = vld [vmem:[%s0 + $0x8] sm:$0xff]
    %v17 = vld [vmem:[%s1] sm:$0x1]
    %v18 = vld [vmem:[%s2] sm:$0x1]
    %v19 = vsub.f32 0.0, %v15
    %v20 = vsub.f32 0.0, %v16
    %v21 = vsub.f32 0.0, %v19
    %v22 = vsub.f32 0.0, %v20
    %v23 = vmax.f32 %v21, 0.0
    %v24 = vmax.f32 %v22, 0.0
    %v25 = vand.u32 2147483647, %v19
    %v26 = vand.u32 2147483647, %v20
    %v27 = vsub.f32 0.0, %v25
    %v28 = vsub.f32 0.0, %v26
    %v29 = vmul.f32 %v27, 1.442695
    %v30 = vpow.pop %v29
    %v31 = vmul.f32 %v28, 1.442695
    %v32 = vpow.pop %v31
    %v33 = vadd.f32 %v30, 1.0
    %v34 = vadd.f32 %v32, 1.0
    %v35 = vlog2.pop %v33
    %v36 = vmul.f32 %v35, 0.6931472
    %v37 = vlog2.pop %v34
    %v38 = vmul.f32 %v37, 0.6931472
    %v39 = vadd.f32 %v23, %v36
    %v40 = vadd.f32 %v24, %v38
    %v41 = vsub.f32 0.0, %v39
    %v42 = vsub.f32 0.0, %v40
    %v43 = vlaneseq
    %v44 = vshrl.u32 %v43, 7
    %v45 = vadd.s32 %v44, 8
    %v46 = vlaneseq
    %v47 = vshrl.u32 %v46, 7
    %v48 = vsub.s32 0, %v47
    %v49 = vrot.slane %v17, %v48
    %vm50 = vcmp.lt.s32.totalorder %v44, %v49
    %vm51 = vcmp.lt.s32.totalorder %v45, %v49
    %vm52 = vcmp.eq.s32.totalorder %v44, %v49
    %vm53 = vcmp.eq.s32.totalorder %v45, %v49
    %v54 = vsel %vm50, %v41, 0.0
    %v55 = vsel %vm51, %v42, 0.0
    %vm56 = vcmask 64512
    %v57 = vsel %vm56, %v54, 0.0
    %v58 = vsel %vm56, %v55, 0.0
    %v59 = vadd.f32 %v57, %v58
    %v60 = vrot.slane %v59, 4
    %v61 = vadd.f32 %v59, %v60
    %v62 = vrot.slane %v61, 2
    %v63 = vadd.f32 %v61, %v62
    %v64 = vrot.slane %v63, 1
    %v65 = vadd.f32 %v63, %v64
    %v66 = vsel %vm52, %v15, 0.0
    %v67 = vsel %vm53, %v16, 0.0
    %v68 = vsel %vm56, %v66, 0.0
    %v69 = vsel %vm56, %v67, 0.0
    %v70 = vadd.f32 %v68, %v69
    %v71 = vrot.slane %v70, 4
    %v72 = vadd.f32 %v70, %v71
    %v73 = vrot.slane %v72, 2
    %v74 = vadd.f32 %v72, %v73
    %v75 = vrot.slane %v74, 1
    %v76 = vadd.f32 %v74, %v75
    %v77 = vsub.f32 0.0, %v76
    %v78 = vmax.f32 %v77, 0.0
    %v79 = vand.u32 2147483647, %v76
    %v80 = vsub.f32 0.0, %v79
    %v81 = vmul.f32 %v80, 1.442695
    %v82 = vpow.pop %v81
    %v83 = vadd.f32 %v82, 1.0
    %v84 = vlog2.pop %v83
    %v85 = vmul.f32 %v84, 0.6931472
    %v86 = vadd.f32 %v78, %v85
    %v87 = vsub.f32 0.0, %v86
    %v88 = vsub.f32 0.0, %v77
    %v89 = vmax.f32 %v88, 0.0
    %v90 = vand.u32 2147483647, %v77
    %v91 = vsub.f32 0.0, %v90
    %v92 = vmul.f32 %v91, 1.442695
    %v93 = vpow.pop %v92
    %v94 = vadd.f32 %v93, 1.0
    %v95 = vlog2.pop %v94
    %v96 = vmul.f32 %v95, 0.6931472
    %v97 = vadd.f32 %v89, %v96
    %v98 = vsub.f32 0.0, %v97
    %v99 = vadd.f32 %v65, %v98
    %v100 = vmax.f32 %v65, -16.118095
    %v101 = vmax.f32 %v99, -16.118095
    %v102 = vmax.f32 %v87, -16.118095
    %v103 = vsub.f32 1.0, %v18
    %v104 = vsub.f32 0.0, %v103
    %v105 = vadd.f32 %v100, %v102
    %v106 = vmul.f32 %v104, %v105
    %v107 = vsub.f32 0.0, %v18
    %v108 = vmul.f32 %v107, %v101
    %v109 = vadd.f32 %v108, %v106
    %v110 = vmul.f32 %v106, 0.0
    %v111 = vadd.f32 %v109, %v110
    %s112 = smul.u32 0, 8
    %v113 = vlaneseq
    %v114 = vand.u32 %v113, 127
    %v115 = vstv %s112
    %v116 = vadd.s32 %v115, %v114
    %vm117 = vcmp.lt.s32.totalorder %v116, 8
    %v118 = vsel %vm117, %v111, 0.0
    %vm119 = vcmask 57344
    %v120 = vsel %vm119, %v118, 0.0
    %121 = vadd.xlane.f32.xlu0 %v120
    %v122 = vpop.xlane.xlu0 %121
    %v123 = vrot.slane %v122, 4
    %v124 = vadd.f32 %v122, %v123
    %v125 = vrot.slane %v124, 2
    %v126 = vadd.f32 %v124, %v125
    %v127 = vrot.slane %v126, 1
    %v128 = vadd.f32 %v126, %v127
    %s129 = vtos %v128
    %s130 = scalar_lea.smem [#allocation2], 0
    %131 = sst [smem:[%s130]] %s129
    // Predicated region
    $region14: #{tpu_custom_call.1} parent=1 // pred_check
      _
    $region15: #{tpu_custom_call.1} parent=1 // pred_check_branch
      %133 = sbr.rel (0) target = $region17
    $region16: #{tpu_custom_call.1} parent=1 // pred_region
      %s135 = ssub.s32 16, 16
      %136 = vsyncadd [#allocation3], %s135
      %139 = dma.smem_to_hbm [#allocation2], 16, %s3, [#allocation3]
    $region17: #{tpu_custom_call.1} parent=1 // pred_fallthru
      _
    // Predicated region
    $region18: #{tpu_custom_call.1} parent=1 // pred_check
      _
    $region19: #{tpu_custom_call.1} parent=1 // pred_check_branch
      %141 = sbr.rel (0) target = $region21
    $region20: #{tpu_custom_call.1} parent=1 // pred_region
      %142 = dma.done [#allocation3], 16
    $region21: #{tpu_custom_call.1} parent=1 // pred_fallthru
      _
    %143 = sfence
    %144 = vsyncpa [#allocation3], 1

</llo_original>
